<compile_context>
chip_gen: v7x
topology: tpu7x:2x2x1
jax: 0.10.0
libtpu: 0.0.40
codegen_flags: <defaults>
</compile_context>

<pallas_src>
import jax
import jax.numpy as jnp
from jax.experimental import pallas as pl
from jax.experimental.pallas import tpu as pltpu

IN_FEATURES = 3
OUT_FEATURES = 16
PACK = 8                              # batch rows packed per 128-lane vreg row
PACKED_IN = PACK * IN_FEATURES        # 24 lanes of real x data per packed row
PACKED_OUT = PACK * OUT_FEATURES      # 128 lanes -> exactly one vreg row
DEFAULT_TB8 = 4096                    # packed rows per grid step (32768 batch rows)
MIN_KERNEL_BATCH = 1024               # below this, plain XLA wins on overhead


def _packed_linear_kernel(xp_ref, m_ref, b_ref, o_ref):
    # xp_ref: (tb8, 24)   packed x, lane l = s*3+k  -> x[8r+s, k]
    # m_ref : (24, 128)   block-diagonal lane-tiled W^T (resident across steps)
    # b_ref : (1, 128)    lane-tiled bias            (resident across steps)
    # o_ref : (tb8, 128)  packed y, lane l = s*16+j -> y[8r+s, j]
    y = jnp.dot(xp_ref[...], m_ref[...], preferred_element_type=jnp.float32)
    o_ref[...] = (y + b_ref[...]).astype(o_ref.dtype)


def linear_pallas(x, weight, bias, *, tb8=DEFAULT_TB8,
                  min_kernel_batch=MIN_KERNEL_BATCH):
    """Computes x @ weight.T + bias (PyTorch nn.Linear(3, 16) semantics).

    x: (B, 3) float32, weight: (16, 3), bias: (16,).
    """
    B = x.shape[0]
    dtype = x.dtype

    # Tiny-batch path (covers the spec's B=1): kernel dispatch + one grid step
    # is pure overhead here; let XLA fuse the whole thing into one small op.
    if B < min_kernel_batch:
        return x @ weight.T + bias[None, :]

    # ---- Pack batch rows onto lanes (free row-major reshapes when 8 | B). ----
    pad = (-B) % PACK                       # <= 7 rows; only non-multiple-of-8 B
    x_in = jnp.pad(x, ((0, pad), (0, 0))) if pad else x
    B8 = x_in.shape[0] // PACK
    xp = x_in.reshape(B8, PACKED_IN)        # (B/8, 24)

    # Lane-tiled constants built once in the wrapper:
    #   M[s*3+k, s*16+j] = W[j, k]   (block diagonal, 8 copies of W^T)
    #   b128[0, s*16+j]  = bias[j]
    m = jnp.kron(jnp.eye(PACK, dtype=dtype), weight.T.astype(dtype))  # (24, 128)
    b128 = jnp.tile(bias.astype(dtype), PACK).reshape(1, PACKED_OUT)  # (1, 128)

    # >= 2 sublane-aligned grid steps so both v7x TensorCores get work; the
    # extra step costs only ~0.35 us on single-TC chips.
    tb8 = min(tb8, pl.cdiv(B8, 2))
    tb8 = max(8, pl.cdiv(tb8, 8) * 8)
    grid = (pl.cdiv(B8, tb8),)              # ragged last block handled by Pallas

    out = pl.pallas_call(
        _packed_linear_kernel,
        out_shape=jax.ShapeDtypeStruct((B8, PACKED_OUT), dtype),
        grid_spec=pltpu.PrefetchScalarGridSpec(
            num_scalar_prefetch=0,
            grid=grid,
            in_specs=[
                # packed x: tiled over the packed-batch dim
                pl.BlockSpec((tb8, PACKED_IN), lambda i: (i, 0)),
                # lane-tiled weight / bias: same block every step -> resident
                pl.BlockSpec((PACKED_IN, PACKED_OUT), lambda i: (0, 0)),
                pl.BlockSpec((1, PACKED_OUT), lambda i: (0, 0)),
            ],
            out_specs=pl.BlockSpec((tb8, PACKED_OUT), lambda i: (i, 0)),
        ),
        compiler_params=pltpu.CompilerParams(
            dimension_semantics=("parallel",),   # independent rows -> megacore
        ),
    )(xp, m, b128)

    out = out.reshape(B8 * PACK, OUT_FEATURES)   # free bitcast reshape
    # Only a non-8-aligned batch pays this slice copy.
    return out[:B] if pad else out


if __name__ == "__main__":
    key = jax.random.PRNGKey(0)
    kx, kw, kb, kbig, krag = jax.random.split(key, 5)

    # PyTorch Linear(3, 16) parameter shapes: W (16, 3), b (16,)
    bound = 1.0 / (IN_FEATURES ** 0.5)
    weight = jax.random.uniform(
        kw, (OUT_FEATURES, IN_FEATURES), minval=-bound, maxval=bound,
        dtype=jnp.float32)
    bias = jax.random.uniform(
        kb, (OUT_FEATURES,), minval=-bound, maxval=bound, dtype=jnp.float32)

    # Spec workload: x1 = torch.randn(1, 3) -> tiny-batch (XLA) path.
    x1 = jax.random.normal(kx, (1, IN_FEATURES), dtype=jnp.float32)
    out1 = linear_pallas(x1, weight, bias)
    jax.block_until_ready(out1)
    ref1 = x1 @ weight.T + bias
    assert out1.shape == (1, OUT_FEATURES)
    assert jnp.allclose(out1, ref1, atol=1e-5, rtol=1e-5)

    # Pallas kernel path: 8-aligned batch, multi-step grid (no pad, no slice).
    xb = jax.random.normal(kbig, (4096, IN_FEATURES), dtype=jnp.float32)
    out_b = linear_pallas(xb, weight, bias, tb8=128)      # 4 grid steps
    jax.block_until_ready(out_b)
    ref_b = xb @ weight.T + bias
    assert out_b.shape == (4096, OUT_FEATURES)
    assert jnp.allclose(out_b, ref_b, atol=1e-5, rtol=1e-5)

    # Ragged path: B not a multiple of 8 nor of the tile (exercises the <=7-row
    # pad and Pallas partial last block).
    xr = jax.random.normal(krag, (4099, IN_FEATURES), dtype=jnp.float32)
    out_r = linear_pallas(xr, weight, bias, tb8=128)
    jax.block_until_ready(out_r)
    ref_r = xr @ weight.T + bias
    assert out_r.shape == (4099, OUT_FEATURES)
    assert jnp.allclose(out_r, ref_r, atol=1e-5, rtol=1e-5)

    print("KERNEL_OK")
</pallas_src>

<mosaic_0001>
module attributes {stable_mosaic.version = 11 : i64} {
  func.func @_packed_linear_kernel(%arg0: i32, %arg1: memref<128x24xf32, #tpu.memory_space<vmem>>, %arg2: memref<24x128xf32, #tpu.memory_space<vmem>>, %arg3: memref<1x128xf32, #tpu.memory_space<vmem>>, %arg4: memref<128x128xf32, #tpu.memory_space<vmem>>) attributes {dimension_semantics = [#tpu.dimension_semantics<parallel>], iteration_bounds = array<i64: 4>, scalar_prefetch = 0 : i64, scratch_operands = 0 : i64, tpu.core_type = #tpu.core_type<tc>, window_params = [{transform_indices = @transform_0, window_bounds = array<i64: 128, 24>}, {pipeline_mode = #tpu.pipeline_mode<synchronous>, transform_indices = @transform_1, window_bounds = array<i64: 24, 128>}, {pipeline_mode = #tpu.pipeline_mode<synchronous>, transform_indices = @transform_2, window_bounds = array<i64: 1, 128>}, {transform_indices = @transform_3, window_bounds = array<i64: 128, 128>}]} {
    %c0 = arith.constant 0 : index
    %c0_0 = arith.constant 0 : index
    %0 = vector.load %arg1[%c0, %c0_0] : memref<128x24xf32, #tpu.memory_space<vmem>>, vector<128x24xf32>
    %c0_1 = arith.constant 0 : index
    %c0_2 = arith.constant 0 : index
    %1 = vector.load %arg2[%c0_1, %c0_2] : memref<24x128xf32, #tpu.memory_space<vmem>>, vector<24x128xf32>
    %cst = arith.constant dense<0.000000e+00> : vector<128x128xf32>
    %2 = tpu.matmul %0, %1, %cst {dimension_numbers = #tpu.dot_dimension_numbers<[1], [0], [0], [1], [0, 0, 1, 1], [], []>} : vector<128x24xf32>, vector<24x128xf32>, vector<128x128xf32> -> vector<128x128xf32>
    %c0_3 = arith.constant 0 : index
    %c0_4 = arith.constant 0 : index
    %3 = vector.load %arg3[%c0_3, %c0_4] : memref<1x128xf32, #tpu.memory_space<vmem>>, vector<1x128xf32>
    %4 = vector.broadcast %3 : vector<1x128xf32> to vector<128x128xf32>
    %5 = arith.addf %2, %4 : vector<128x128xf32>
    %c0_5 = arith.constant 0 : index
    %c0_6 = arith.constant 0 : index
    %6 = vector.load %arg4[%c0_5, %c0_6] : memref<128x128xf32, #tpu.memory_space<vmem>>, vector<128x128xf32>
    tpu.vector_store %arg4[%c0_5, %c0_6], %5 {strides = array<i32>} : memref<128x128xf32, #tpu.memory_space<vmem>>, vector<128x128xf32>,
    return
  }
  func.func @transform_0(%arg0: i32) -> (i32, i32) {
    %c0_i32 = arith.constant 0 : i32
    %c0_i32_0 = arith.constant 0 : i32
    return %arg0, %c0_i32 : i32, i32
  }
  func.func @transform_1(%arg0: i32) -> (i32, i32) {
    %c0_i32 = arith.constant 0 : i32
    %c0_i32_0 = arith.constant 0 : i32
    %c0_i32_1 = arith.constant 0 : i32
    return %c0_i32, %c0_i32_0 : i32, i32
  }
  func.func @transform_2(%arg0: i32) -> (i32, i32) {
    %c0_i32 = arith.constant 0 : i32
    %c0_i32_0 = arith.constant 0 : i32
    %c0_i32_1 = arith.constant 0 : i32
    return %c0_i32, %c0_i32_0 : i32, i32
  }
  func.func @transform_3(%arg0: i32) -> (i32, i32) {
    %c0_i32 = arith.constant 0 : i32
    %c0_i32_0 = arith.constant 0 : i32
    return %arg0, %c0_i32 : i32, i32
  }
}

</mosaic_0001>

<llo_original>
// kernel: tpu_custom_call.1
$region0: #{tpu_custom_call.1}
  #allocation0 [shape = 'u32[]', space=smem, size = 0x4, offset = 0x4, fixed_abs, tag = 'smem constant byte address 0x4 - core index']
  #allocation1 [shape = 'u32[144,128]{1,0:T(1,128)}', space=vmem, size = 0x12000, scoped, tag = 'internal scratch']
  %s0 = inlined_call_operand.vmem [shape: f32[512,24], index: 0, kind: input, shape index: {}]
  %s1 = inlined_call_operand.vmem [shape: f32[24,128], index: 1, kind: input, shape index: {}]
  %s2 = inlined_call_operand.vmem [shape: f32[1,128], index: 2, kind: input, shape index: {}]
  %s3 = inlined_call_operand.hbm [shape: f32[512,128], index: 3, kind: output, shape index: {}]
  %s4 = sld [smem:[#allocation0]]
  $region45: #{tpu_custom_call.1} parent=0
    _
  %s6 = ssub.s32 1, %s4
  %s7 = scalar_select 0, %s6, %s4
  $region1: #{tpu_custom_call.1} parent=0
    #allocation2 [shape = 'u8[131072]{0}', space=vmem, size = 0x20000, scoped, tag = 'output window, operand 0']
    #allocation3 [shape = 's32[2]{0}', space=sflag, size = 0x8, scoped, tag = 'scoped memory for tpu_custom_call.1']
    %8 = vsyncpa [#allocation3], 0
    %s9 = scalar_lea.sflag [#allocation3], 1
    %10 = vsyncpa %s9, 0
    loop: start=0, step=1, limit=6
    $region2: #{tpu_custom_call.1} parent=1 // loop_pre_header
      _
    $region3: #{tpu_custom_call.1} parent=1 // loop_header
      %s12 = sphi 0, %s16
      %p13 = scmp.ge.s32.totalorder %s12, 6
      %s22 = sphi 0, %s24
      %s25 = sphi 0, %s22
      %s26 = sphi 0, %s25
      %s42 = sphi 0, %s26
      %s46 = sphi 0, %s46
      %s48 = sphi 0, %s46
      %s49 = sphi 0, %s48
      %s63 = sphi 0, %s49
      %s67 = sphi 0, %s67
      %s69 = sphi 0, %s67
      %s70 = sphi 0, %s69
      %s84 = sphi 0, %s70
      %s90 = sphi 0, %s92
      %s93 = sphi 0, %s90
      %s94 = sphi 0, %s93
      %s110 = sphi 0, %s94
    $region4: #{tpu_custom_call.1} parent=1 // loop_header_branch
      %15 = sbr.rel (%p13) target = $region8
    $region5: #{tpu_custom_call.1} parent=1 // loop_body
      %s17 = ssub.s32 %s12, 1
      %s18 = ssub.s32 %s12, 2
      %s19 = sadd.s32 %s12, 1
      %s20 = ssub.s32 %s12, %s19
      %p21 = scmp.eq.s32.totalorder %s20, 0
      %s23 = sadd.s32 %s22, 1
      %s24 = scalar_select %p21, %s22, %s23
      %p27 = pneg %p21
      %p28 = scmp.eq.s32.totalorder %s12, 3
      %p29 = por %p27, %p28
      %p30 = scmp.ne.s32.totalorder %s22, %s25
      %p31 = scmp.eq.s32.totalorder %s12, 0
      %p32 = por %p30, %p31
      %p33 = scmp.ne.s32.totalorder %s22, %s25
      %p34 = scmp.eq.s32.totalorder %s17, 3
      %p35 = por %p33, %p34
      %p36 = scmp.ne.s32.totalorder %s25, %s26
      %p37 = scmp.eq.s32.totalorder %s17, 0
      %p38 = por %p36, %p37
      %p39 = scmp.ne.s32.totalorder %s25, %s26
      %p40 = scmp.eq.s32.totalorder %s18, 3
      %p41 = por %p39, %p40
      %p43 = scmp.ne.s32.totalorder %s26, %s42
      %p44 = scmp.eq.s32.totalorder %s18, 0
      %p45 = por %p43, %p44
      %s47 = sadd.s32 %s46, 1
      %p50 = scmp.eq.s32.totalorder %s12, 3
      %p51 = scmp.ne.s32.totalorder %s46, %s48
      %p52 = scmp.eq.s32.totalorder %s12, 0
      %p53 = por %p51, %p52
      %p54 = scmp.ne.s32.totalorder %s46, %s48
      %p55 = scmp.eq.s32.totalorder %s17, 3
      %p56 = por %p54, %p55
      %p57 = scmp.ne.s32.totalorder %s48, %s49
      %p58 = scmp.eq.s32.totalorder %s17, 0
      %p59 = por %p57, %p58
      %p60 = scmp.ne.s32.totalorder %s48, %s49
      %p61 = scmp.eq.s32.totalorder %s18, 3
      %p62 = por %p60, %p61
      %p64 = scmp.ne.s32.totalorder %s49, %s63
      %p65 = scmp.eq.s32.totalorder %s18, 0
      %p66 = por %p64, %p65
      %s68 = sadd.s32 %s67, 1
      %p71 = scmp.eq.s32.totalorder %s12, 3
      %p72 = scmp.ne.s32.totalorder %s67, %s69
      %p73 = scmp.eq.s32.totalorder %s12, 0
      %p74 = por %p72, %p73
      %p75 = scmp.ne.s32.totalorder %s67, %s69
      %p76 = scmp.eq.s32.totalorder %s17, 3
      %p77 = por %p75, %p76
      %p78 = scmp.ne.s32.totalorder %s69, %s70
      %p79 = scmp.eq.s32.totalorder %s17, 0
      %p80 = por %p78, %p79
      %p81 = scmp.ne.s32.totalorder %s69, %s70
      %p82 = scmp.eq.s32.totalorder %s18, 3
      %p83 = por %p81, %p82
      %p85 = scmp.ne.s32.totalorder %s70, %s84
      %p86 = scmp.eq.s32.totalorder %s18, 0
      %p87 = por %p85, %p86
      %s88 = ssub.s32 %s12, %s19
      %p89 = scmp.eq.s32.totalorder %s88, 0
      %s91 = sadd.s32 %s90, 1
      %s92 = scalar_select %p89, %s90, %s91
      %p95 = pneg %p89
      %p96 = scmp.eq.s32.totalorder %s12, 3
      %p97 = por %p95, %p96
      %p98 = scmp.ne.s32.totalorder %s90, %s93
      %p99 = scmp.eq.s32.totalorder %s12, 0
      %p100 = por %p98, %p99
      %p101 = scmp.ne.s32.totalorder %s90, %s93
      %p102 = scmp.eq.s32.totalorder %s17, 3
      %p103 = por %p101, %p102
      %p104 = scmp.ne.s32.totalorder %s93, %s94
      %p105 = scmp.eq.s32.totalorder %s17, 0
      %p106 = por %p104, %p105
      %p107 = scmp.ne.s32.totalorder %s93, %s94
      %p108 = scmp.eq.s32.totalorder %s18, 3
      %p109 = por %p107, %p108
      %p111 = scmp.ne.s32.totalorder %s94, %s110
      %p112 = scmp.eq.s32.totalorder %s18, 0
      %p113 = por %p111, %p112
      %p114 = scmp.le.s32.totalorder 1, %s12
      %p115 = scmp.lt.s32.totalorder %s12, 5
      %p116 = pnand %p114, %p115
      %p117 = pneg %p116
      // Predicated region
      $region9: #{tpu_custom_call.1} parent=5 // pred_check
        _
      $region10: #{tpu_custom_call.1} parent=5 // pred_check_branch
        %119 = sbr.rel (%p116) target = $region12
      $region11: #{tpu_custom_call.1} parent=5 // pred_region
        %s120 = ssub.s32 %s12, 1
        // Predicated region
        $region13: #{tpu_custom_call.1} parent=11 // pred_check
          %p121 = pneg %p59
        $region14: #{tpu_custom_call.1} parent=11 // pred_check_branch
          %123 = sbr.rel (%p121) target = $region16
        $region15: #{tpu_custom_call.1} parent=11 // pred_region
          _
        $region16: #{tpu_custom_call.1} parent=11 // pred_fallthru
          _
        // Predicated region
        $region17: #{tpu_custom_call.1} parent=11 // pred_check
          %p124 = pneg %p80
        $region18: #{tpu_custom_call.1} parent=11 // pred_check_branch
          %126 = sbr.rel (%p124) target = $region20
        $region19: #{tpu_custom_call.1} parent=11 // pred_region
          _
        $region20: #{tpu_custom_call.1} parent=11 // pred_fallthru
          _
      $region12: #{tpu_custom_call.1} parent=5 // pred_fallthru
        _
      %p127 = scmp.lt.s32.totalorder %s12, 4
      // Predicated region
      $region21: #{tpu_custom_call.1} parent=5 // pred_check
        %p128 = pneg %p127
      $region22: #{tpu_custom_call.1} parent=5 // pred_check_branch
        %130 = sbr.rel (%p128) target = $region24
      $region23: #{tpu_custom_call.1} parent=5 // pred_region
        // Predicated region
        $region25: #{tpu_custom_call.1} parent=23 // pred_check
          %p131 = pneg %p32
        $region26: #{tpu_custom_call.1} parent=23 // pred_check_branch
          %133 = sbr.rel (%p131) target = $region28
        $region27: #{tpu_custom_call.1} parent=23 // pred_region
          %s134 = smul.u32 16, %s12
          %p135 = scmp.lt.s32.totalorder %s134, 63
          %s136 = scalar_select %p135, %s134, 63
          %s137 = smul.addr %s136, 8
          %s138 = scalar_lea.vmem %s0, %s137
          %s139 = smul.u32 16, %s12
        $region28: #{tpu_custom_call.1} parent=23 // pred_fallthru
          _
      $region24: #{tpu_custom_call.1} parent=5 // pred_fallthru
        _
      %p140 = scmp.le.s32.totalorder 1, %s12
      %p141 = scmp.lt.s32.totalorder %s12, 5
      %p142 = pnand %p140, %p141
      %p143 = pneg %p142
      // Predicated region
      $region29: #{tpu_custom_call.1} parent=5 // pred_check
        _
      $region30: #{tpu_custom_call.1} parent=5 // pred_check_branch
        %145 = sbr.rel (%p142) target = $region32
      $region31: #{tpu_custom_call.1} parent=5 // pred_region
        %s146 = ssub.s32 %s12, 1
        %s147 = smul.u32 16, %s17
        %p148 = scmp.lt.s32.totalorder %s147, 63
        %s149 = scalar_select %p148, %s147, 63
        %s150 = smul.addr %s149, 8
        %s151 = scalar_lea.vmem %s0, %s150
        %p152 = pneg %p38
        %p153 = pneg %p35
        %p154 = pneg %p59
        %p155 = pneg %p56
        %p156 = pneg %p80
        %p157 = pneg %p77
        %p158 = pneg %p106
        %p159 = pneg %p103
        %s160 = sand.u32 %s93, 1
        %s161 = scalar_lea.sflag [#allocation3], %s160
        %s162 = sand.u32 %s93, 1
        %s163 = smul.addr %s162, 128
        %s164 = scalar_lea.vmem [#allocation2], %s163
        %s165 = smul.u32 16, %s17
        %p166 = scmp.lt.s32.totalorder %s165, 63
        %s167 = scalar_select %p166, %s165, 63
        %s168 = smul.addr %s167, 8
        %s169 = scalar_lea.vmem %s0, %s168
        %s170 = smul.u32 16, %s17
        %s171 = smul.u32 16, %s17
        %v172 = vld [vmem:[%s169] sm:$0xff]
        %v173 = vld [vmem:[%s169 + $0x8] sm:$0xff]
        %v174 = vld [vmem:[%s169 + $0x10] sm:$0xff]
        %v175 = vld [vmem:[%s169 + $0x18] sm:$0xff]
        %v176 = vld [vmem:[%s169 + $0x20] sm:$0xff]
        %v177 = vld [vmem:[%s169 + $0x28] sm:$0xff]
        %v178 = vld [vmem:[%s169 + $0x30] sm:$0xff]
        %v179 = vld [vmem:[%s169 + $0x38] sm:$0xff]
        %v180 = vld [vmem:[%s169 + $0x40] sm:$0xff]
        %v181 = vld [vmem:[%s169 + $0x48] sm:$0xff]
        %v182 = vld [vmem:[%s169 + $0x50] sm:$0xff]
        %v183 = vld [vmem:[%s169 + $0x58] sm:$0xff]
        %v184 = vld [vmem:[%s169 + $0x60] sm:$0xff]
        %v185 = vld [vmem:[%s169 + $0x68] sm:$0xff]
        %v186 = vld [vmem:[%s169 + $0x70] sm:$0xff]
        %v187 = vld [vmem:[%s169 + $0x78] sm:$0xff]
        %v188 = vld [vmem:[%s1] sm:$0xff]
        %v189 = vld [vmem:[%s1 + $0x8] sm:$0xff]
        %v190 = vld [vmem:[%s1 + $0x10] sm:$0xff]
        %v191 = vld [vmem:[%s2] sm:$0x1]
        %v193 = vlaneseq
        %v194 = vshrl.u32 %v193, 7
        %v195 = vsub.s32 0, %v194
        %v196 = vrot.slane %v191, %v195
        %vm198 = vcmask 195584
        %v200 = vsel %vm198, %v172, 0
        %v203 = vsel %vm198, %v173, 0
        %v206 = vsel %vm198, %v174, 0
        %v209 = vsel %vm198, %v175, 0
        %v212 = vsel %vm198, %v176, 0
        %v215 = vsel %vm198, %v177, 0
        %v218 = vsel %vm198, %v178, 0
        %v221 = vsel %vm198, %v179, 0
        %v224 = vsel %vm198, %v180, 0
        %v227 = vsel %vm198, %v181, 0
        %v230 = vsel %vm198, %v182, 0
        %v233 = vsel %vm198, %v183, 0
        %v236 = vsel %vm198, %v184, 0
        %v239 = vsel %vm198, %v185, 0
        %v242 = vsel %vm198, %v186, 0
        %v245 = vsel %vm198, %v187, 0
        %247 = vmatprep.subr.mxu0 0.0
        %248 = vmatpush1.msra.mxu0 %v188
        %249 = vmatprep.subr.mxu0 0.0
        %250 = vmatpush1.msra.mxu0 %v189
        %251 = vmatprep.subr.mxu0 0.0
        %252 = vmatpush1.msra.mxu0 %v190
        %253 = vmatprep.subr.mxu0 0.0
        %254 = vmatpush1.msra.mxu0 0.0
        %255 = vmatprep.subr.mxu0 0.0
        %256 = vmatpush1.msra.mxu0 0.0
        %257 = vmatprep.subr.mxu0 0.0
        %258 = vmatpush1.msra.mxu0 0.0
        %259 = vmatprep.subr.mxu0 0.0
        %260 = vmatpush1.msra.mxu0 0.0
        %261 = vmatprep.subr.mxu0 0.0
        %262 = vmatpush1.msra.mxu0 0.0
        %263 = vmatprep.subr.mxu0 0.0
        %264 = vmatpush1.msra.mxu0 0.0
        %265 = vmatprep.subr.mxu0 0.0
        %266 = vmatpush1.msra.mxu0 0.0
        %267 = vmatprep.subr.mxu0 0.0
        %268 = vmatpush1.msra.mxu0 0.0
        %269 = vmatprep.subr.mxu0 0.0
        %270 = vmatpush1.msra.mxu0 0.0
        %271 = vmatprep.subr.mxu0 0.0
        %272 = vmatpush1.msra.mxu0 0.0
        %273 = vmatprep.subr.mxu0 0.0
        %274 = vmatpush1.msra.mxu0 0.0
        %275 = vmatprep.subr.mxu0 0.0
        %276 = vmatpush1.msra.mxu0 0.0
        %277 = vmatprep.subr.mxu0 0.0
        %278 = vmatpush1.msra.mxu0 0.0
        %279 = vmatprep.subr.mxu0 0.0
        %280 = vmatpush1.msra.mxu0 0.0
        %281 = vmatprep.subr.mxu0 0.0
        %282 = vmatpush1.msra.mxu0 0.0
        %283 = vmatprep.subr.mxu0 0.0
        %284 = vmatpush1.msra.mxu0 0.0
        %285 = vmatprep.subr.mxu0 0.0
        %286 = vmatpush1.msra.mxu0 0.0
        %287 = vmatprep.subr.mxu0 0.0
        %288 = vmatpush1.msra.mxu0 0.0
        %289 = vmatprep.subr.mxu0 0.0
        %290 = vmatpush1.msra.mxu0 0.0
        %291 = vmatprep.subr.mxu0 0.0
        %292 = vmatpush1.msra.mxu0 0.0
        %293 = vmatprep.subr.mxu0 0.0
        %294 = vmatpush1.msra.mxu0 0.0
        %295 = vmatprep.subr.mxu0 0.0
        %296 = vmatpush1.msra.mxu0 0.0
        %297 = vmatprep.subr.mxu0 0.0
        %298 = vmatpush1.msra.mxu0 0.0
        %299 = vmatprep.subr.mxu0 0.0
        %300 = vmatpush1.msra.mxu0 0.0
        %301 = vmatprep.subr.mxu0 0.0
        %302 = vmatpush1.msra.mxu0 0.0
        %303 = vmatprep.subr.mxu0 0.0
        %304 = vmatpush1.msra.mxu0 0.0
        %305 = vmatprep.subr.mxu0 0.0
        %306 = vmatpush1.msra.mxu0 0.0
        %307 = vmatprep.subr.mxu0 0.0
        %308 = vmatpush1.msra.mxu0 0.0
        %309 = vmatprep.subr.mxu0 0.0
        %310 = vmatpush1.msra.mxu0 0.0
        %311 = vmatprep.mubr.f32.mxu0 0.0
        %312 = vmatmul.mubr.f32.gmra.mrb[0].mxu0 %v200
        %v313 = vpop.f32.mrb[0].mxu0
        %v314 = vadd.f32 %v196, %v313
        %v315 = vpop.f32.mrb[0].mxu0
        %316 = vmatprep.mubr.f32.mxu0 0.0
        %317 = vmatmul.mubr.f32.gmra.mrb[0].mxu0 %v203
        %v318 = vpop.f32.mrb[0].mxu0
        %v319 = vadd.f32 %v196, %v318
        %v320 = vpop.f32.mrb[0].mxu0
        %321 = vmatprep.mubr.f32.mxu0 0.0
        %322 = vmatmul.mubr.f32.gmra.mrb[0].mxu0 %v206
        %v323 = vpop.f32.mrb[0].mxu0
        %v324 = vadd.f32 %v196, %v323
        %v325 = vpop.f32.mrb[0].mxu0
        %326 = vmatprep.mubr.f32.mxu0 0.0
        %327 = vmatmul.mubr.f32.gmra.mrb[0].mxu0 %v209
        %v328 = vpop.f32.mrb[0].mxu0
        %v329 = vadd.f32 %v196, %v328
        %v330 = vpop.f32.mrb[0].mxu0
        %331 = vmatprep.mubr.f32.mxu0 0.0
        %332 = vmatmul.mubr.f32.gmra.mrb[0].mxu0 %v212
        %v333 = vpop.f32.mrb[0].mxu0
        %v334 = vadd.f32 %v196, %v333
        %v335 = vpop.f32.mrb[0].mxu0
        %336 = vmatprep.mubr.f32.mxu0 0.0
        %337 = vmatmul.mubr.f32.gmra.mrb[0].mxu0 %v215
        %v338 = vpop.f32.mrb[0].mxu0
        %v339 = vadd.f32 %v196, %v338
        %v340 = vpop.f32.mrb[0].mxu0
        %341 = vmatprep.mubr.f32.mxu0 0.0
        %342 = vmatmul.mubr.f32.gmra.mrb[0].mxu0 %v218
        %v343 = vpop.f32.mrb[0].mxu0
        %v344 = vadd.f32 %v196, %v343
        %v345 = vpop.f32.mrb[0].mxu0
        %346 = vmatprep.mubr.f32.mxu0 0.0
        %347 = vmatmul.mubr.f32.gmra.mrb[0].mxu0 %v221
        %v348 = vpop.f32.mrb[0].mxu0
        %v349 = vadd.f32 %v196, %v348
        %v350 = vpop.f32.mrb[0].mxu0
        %351 = vmatprep.mubr.f32.mxu0 0.0
        %352 = vmatmul.mubr.f32.gmra.mrb[0].mxu0 %v224
        %v353 = vpop.f32.mrb[0].mxu0
        %v354 = vadd.f32 %v196, %v353
        %v355 = vpop.f32.mrb[0].mxu0
        %356 = vmatprep.mubr.f32.mxu0 0.0
        %357 = vmatmul.mubr.f32.gmra.mrb[0].mxu0 %v227
        %v358 = vpop.f32.mrb[0].mxu0
        %v359 = vadd.f32 %v196, %v358
        %v360 = vpop.f32.mrb[0].mxu0
        %361 = vmatprep.mubr.f32.mxu0 0.0
        %362 = vmatmul.mubr.f32.gmra.mrb[0].mxu0 %v230
        %v363 = vpop.f32.mrb[0].mxu0
        %v364 = vadd.f32 %v196, %v363
        %v365 = vpop.f32.mrb[0].mxu0
        %366 = vmatprep.mubr.f32.mxu0 0.0
        %367 = vmatmul.mubr.f32.gmra.mrb[0].mxu0 %v233
        %v368 = vpop.f32.mrb[0].mxu0
        %v369 = vadd.f32 %v196, %v368
        %v370 = vpop.f32.mrb[0].mxu0
        %371 = vmatprep.mubr.f32.mxu0 0.0
        %372 = vmatmul.mubr.f32.gmra.mrb[0].mxu0 %v236
        %v373 = vpop.f32.mrb[0].mxu0
        %v374 = vadd.f32 %v196, %v373
        %v375 = vpop.f32.mrb[0].mxu0
        %376 = vmatprep.mubr.f32.mxu0 0.0
        %377 = vmatmul.mubr.f32.gmra.mrb[0].mxu0 %v239
        %v378 = vpop.f32.mrb[0].mxu0
        %v379 = vadd.f32 %v196, %v378
        %v380 = vpop.f32.mrb[0].mxu0
        %381 = vmatprep.mubr.f32.mxu0 0.0
        %382 = vmatmul.mubr.f32.gmra.mrb[0].mxu0 %v242
        %v383 = vpop.f32.mrb[0].mxu0
        %v384 = vadd.f32 %v196, %v383
        %v385 = vpop.f32.mrb[0].mxu0
        %386 = vmatprep.mubr.f32.mxu0 0.0
        %387 = vmatmul.mubr.f32.gmra.mrb[0].mxu0 %v245
        %v388 = vpop.f32.mrb[0].mxu0
        %v389 = vadd.f32 %v196, %v388
        %v390 = vpop.f32.mrb[0].mxu0
        %391 = vdwg.mxu0
        %392 = vst [vmem:[%s164] sm:$0xff] %v314
        %393 = vst [vmem:[%s164 + $0x8] sm:$0xff] %v319
        %394 = vst [vmem:[%s164 + $0x10] sm:$0xff] %v324
        %395 = vst [vmem:[%s164 + $0x18] sm:$0xff] %v329
        %396 = vst [vmem:[%s164 + $0x20] sm:$0xff] %v334
        %397 = vst [vmem:[%s164 + $0x28] sm:$0xff] %v339
        %398 = vst [vmem:[%s164 + $0x30] sm:$0xff] %v344
        %399 = vst [vmem:[%s164 + $0x38] sm:$0xff] %v349
        %400 = vst [vmem:[%s164 + $0x40] sm:$0xff] %v354
        %401 = vst [vmem:[%s164 + $0x48] sm:$0xff] %v359
        %402 = vst [vmem:[%s164 + $0x50] sm:$0xff] %v364
        %403 = vst [vmem:[%s164 + $0x58] sm:$0xff] %v369
        %404 = vst [vmem:[%s164 + $0x60] sm:$0xff] %v374
        %405 = vst [vmem:[%s164 + $0x68] sm:$0xff] %v379
        %406 = vst [vmem:[%s164 + $0x70] sm:$0xff] %v384
        %407 = vst [vmem:[%s164 + $0x78] sm:$0xff] %v389
        %s408 = sand.u32 %s93, 1
        %s409 = scalar_lea.sflag [#allocation3], %s408
        %s410 = sand.u32 %s93, 1
        %s411 = smul.addr %s410, 128
        %s412 = scalar_lea.vmem [#allocation2], %s411
        // Predicated region
        $region33: #{tpu_custom_call.1} parent=31 // pred_check
          %p413 = pneg %p103
        $region34: #{tpu_custom_call.1} parent=31 // pred_check_branch
          %415 = sbr.rel (%p413) target = $region36
        $region35: #{tpu_custom_call.1} parent=31 // pred_region
          %s416 = smul.u32 16, %s17
          %s418 = ssub.s32 2048, 2048
          %419 = vsyncadd %s409, %s418
          %s420 = smul.addr %s416, 128
          %s421 = scalar_lea.hbm %s3, %s420
          %s422 = sshll.u32 %s412, 4
          %s423 = int_to_ptr.vmem [resolvable:$true] %s422
          %428 = dma.vmem_to_hbm [thread:$0]  %s423, 2048, %s421, %s409, 128, 128, 8
        $region36: #{tpu_custom_call.1} parent=31 // pred_fallthru
          _
      $region32: #{tpu_custom_call.1} parent=5 // pred_fallthru
        _
      %p429 = scmp.le.s32.totalorder 2, %s12
      // Predicated region
      $region37: #{tpu_custom_call.1} parent=5 // pred_check
        %p430 = pneg %p429
      $region38: #{tpu_custom_call.1} parent=5 // pred_check_branch
        %432 = sbr.rel (%p430) target = $region40
      $region39: #{tpu_custom_call.1} parent=5 // pred_region
        %s433 = ssub.s32 %s12, 2
        // Predicated region
        $region41: #{tpu_custom_call.1} parent=39 // pred_check
          %p434 = pneg %p109
        $region42: #{tpu_custom_call.1} parent=39 // pred_check_branch
          %436 = sbr.rel (%p434) target = $region44
        $region43: #{tpu_custom_call.1} parent=39 // pred_region
          %s437 = sand.u32 %s94, 1
          %s438 = scalar_lea.sflag [#allocation3], %s437
          %s439 = sand.u32 %s94, 1
          %s440 = smul.addr %s439, 128
          %s441 = scalar_lea.vmem [#allocation2], %s440
          %442 = dma.done %s438, 2048
        $region44: #{tpu_custom_call.1} parent=39 // pred_fallthru
          _
      $region40: #{tpu_custom_call.1} parent=5 // pred_fallthru
        _
    $region6: #{tpu_custom_call.1} parent=1 // loop_footer
      %s16 = sadd.s32 1, %s12
    $region7: #{tpu_custom_call.1} parent=1 // loop_footer_branch
      %11 = sbr.rel target = $region3
    $region8: #{tpu_custom_call.1} parent=1 // loop_exit
      _
    %443 = vsyncpa [#allocation3], 1
    %s444 = scalar_lea.sflag [#allocation3], 1
    %445 = vsyncpa %s444, 1

</llo_original>
